<compile_context>
chip_gen: v6e
topology: v6e:2x2x1
jax: 0.10.0
libtpu: 0.0.40
codegen_flags: <defaults>
</compile_context>

<pallas_src>
from functools import partial
from typing import NamedTuple

import jax
import jax.numpy as jnp
from jax.experimental import pallas as pl
from jax.experimental.pallas import tpu as pltpu


def _cdiv(a, b):
    return -(-a // b)


def _round_up(x, m):
    return ((x + m - 1) // m) * m


class ActorParams(NamedTuple):
    w1: jax.Array  # (state_dim, 1024)  bf16
    b1: jax.Array  # (1, 1024)          f32
    w2: jax.Array  # (1024, A_pad)      bf16, zero-padded action columns
    b2: jax.Array  # (1, A_pad)         f32,  zero-padded action columns


def _actor_kernel(ma_ref, x_ref, w1_ref, b1_ref, w2_ref, b2_ref, out_ref):
    # Layer 1: (TB, S) @ (S, H) on the MXU, f32 accumulation; bias+relu in f32.
    h = jnp.dot(x_ref[...], w1_ref[...], preferred_element_type=jnp.float32)
    h = jnp.maximum(h + b1_ref[...], 0.0)

    # Layer 2: (TB, H) @ (H, A_pad); cast activations to the weight dtype so
    # the MXU runs at native rate, keep f32 accumulation.
    a = jnp.dot(h.astype(w2_ref.dtype), w2_ref[...],
                preferred_element_type=jnp.float32)
    a = a + b2_ref[...]

    max_action = ma_ref[0]  # scalar-prefetch SMEM value
    out_ref[...] = (max_action * jnp.tanh(a)).astype(out_ref.dtype)


def prepare_actor_params(w1, b1, w2, b2, *, param_dtype=jnp.bfloat16):
    """One-time conversion (hoisted out of the per-call path):
    cast weights to bf16, biases to f32, zero-pad the action dim to 128 lanes.
    Returns (ActorParams, action_dim)."""
    action_dim = w2.shape[1]
    a_pad = _round_up(action_dim, 128)
    w1_p = jnp.asarray(w1, param_dtype)
    b1_p = jnp.asarray(b1, jnp.float32).reshape(1, -1)
    w2_p = jnp.pad(jnp.asarray(w2, param_dtype), ((0, 0), (0, a_pad - action_dim)))
    b2_p = jnp.pad(jnp.asarray(b2, jnp.float32).reshape(1, -1),
                   ((0, 0), (0, a_pad - action_dim)))
    return ActorParams(w1_p, b1_p, w2_p, b2_p), action_dim


def _select_batch_tiling(B, batch_tile):
    """Balanced batch tiling: choose the tile count first, then a tile height
    rounded up to 8 sublanes, so padding is < 8 rows per tile."""
    num_tiles = _cdiv(B, batch_tile)
    # v7x megacore: when there is enough work, give each TensorCore a tile.
    if B >= 128 and num_tiles < 2:
        num_tiles = 2
    TB = _round_up(_cdiv(B, num_tiles), 8)
    B_pad = num_tiles * TB
    return TB, B_pad, num_tiles


def _vmem_limit_bytes(TB, S, H, A_pad, param_itemsize):
    weights = (S * H + H * A_pad) * param_itemsize * 2     # double-buffered
    biases = (H + A_pad) * 4 * 2
    x_tiles = TB * S * param_itemsize * 2
    out_tiles = TB * A_pad * 4 * 2
    intermediates = TB * H * 4 + TB * A_pad * 4            # f32 relu act + pre-tanh
    est = weights + biases + x_tiles + out_tiles + intermediates
    # 2x headroom, floor 16 MiB, cap at v7x's 64 MiB physical VMEM.
    return int(min(max(2 * est, 16 * 1024 * 1024), 64 * 1024 * 1024))


@partial(jax.jit, static_argnames=("action_dim", "batch_tile"))
def actor_forward(state, params: ActorParams, max_action, *,
                  action_dim, batch_tile=512):
    """state: (B, state_dim) f32; params: from prepare_actor_params()."""
    B, S = state.shape
    H = params.w1.shape[1]
    A_pad = params.w2.shape[1]

    TB, B_pad, num_tiles = _select_batch_tiling(B, batch_tile)

    # Only the activations are touched per call; padded batch rows are sliced
    # off afterwards (their outputs are garbage and must never be kept).
    x_p = state.astype(params.w1.dtype)
    if B_pad != B:
        x_p = jnp.pad(x_p, ((0, B_pad - B), (0, 0)))

    ma = jnp.full((1,), max_action, dtype=jnp.float32)

    flops = 2 * B_pad * (S * H + H * A_pad)
    bytes_accessed = (
        x_p.size * x_p.dtype.itemsize
        + params.w1.size * params.w1.dtype.itemsize
        + params.w2.size * params.w2.dtype.itemsize
        + params.b1.size * 4 + params.b2.size * 4
        + B_pad * A_pad * 4
    )
    cost = pl.CostEstimate(flops=flops,
                           transcendentals=B_pad * A_pad,
                           bytes_accessed=bytes_accessed)

    grid_spec = pltpu.PrefetchScalarGridSpec(
        num_scalar_prefetch=1,          # max_action -> SMEM, passed to index_maps
        grid=(num_tiles,),
        in_specs=[
            pl.BlockSpec((TB, S), lambda i, ma: (i, 0)),       # state tile
            pl.BlockSpec((S, H), lambda i, ma: (0, 0)),        # w1 (resident)
            pl.BlockSpec((1, H), lambda i, ma: (0, 0)),        # b1
            pl.BlockSpec((H, A_pad), lambda i, ma: (0, 0)),    # w2 (resident)
            pl.BlockSpec((1, A_pad), lambda i, ma: (0, 0)),    # b2
        ],
        out_specs=pl.BlockSpec((TB, A_pad), lambda i, ma: (i, 0)),
    )

    out = pl.pallas_call(
        _actor_kernel,
        out_shape=jax.ShapeDtypeStruct((B_pad, A_pad), jnp.float32),
        grid_spec=grid_spec,
        compiler_params=pltpu.CompilerParams(
            # Batch tiles are independent -> shard across TCs on v7x.
            dimension_semantics=("parallel",),
            vmem_limit_bytes=_vmem_limit_bytes(
                TB, S, H, A_pad, params.w1.dtype.itemsize),
        ),
        cost_estimate=cost,
    )(ma, x_p, params.w1, params.b1, params.w2, params.b2)

    return out[:B, :action_dim]


def init_actor_params(key, state_dim, action_dim, hidden=1024):
    """Deterministic init mimicking nn.Linear (uniform +/- 1/sqrt(fan_in)).
    Weights returned already transposed to (in, out)."""
    k1, k2, k3, k4 = jax.random.split(key, 4)
    bound1 = 1.0 / jnp.sqrt(state_dim)
    bound2 = 1.0 / jnp.sqrt(hidden)
    w1 = jax.random.uniform(k1, (state_dim, hidden), jnp.float32, -bound1, bound1)
    b1 = jax.random.uniform(k2, (1, hidden), jnp.float32, -bound1, bound1)
    w2 = jax.random.uniform(k3, (hidden, action_dim), jnp.float32, -bound2, bound2)
    b2 = jax.random.uniform(k4, (1, action_dim), jnp.float32, -bound2, bound2)
    return w1, b1, w2, b2


if __name__ == "__main__":
    key = jax.random.PRNGKey(0)
    k_state, k_params, k_state2 = jax.random.split(key, 3)

    B, STATE_DIM, ACTION_DIM = 8, 32, 8
    MAX_ACTION = 2.0

    w1, b1, w2, b2 = init_actor_params(k_params, STATE_DIM, ACTION_DIM)
    # One-time cast/pad (hoisted out of the per-call forward).
    params, action_dim = prepare_actor_params(w1, b1, w2, b2)

    state = jax.random.normal(k_state, (B, STATE_DIM), jnp.float32)
    out = actor_forward(state, params, MAX_ACTION, action_dim=action_dim)
    out = jax.block_until_ready(out)
    assert out.shape == (B, ACTION_DIM)

    # Reference 1: same math with identically bf16-cast operands (f32 accum),
    # isolating MXU accumulation-order noise -> tight tolerance.
    def ref_bf16(x):
        bf = jnp.bfloat16
        x32 = x.astype(bf).astype(jnp.float32)
        w1_32 = w1.astype(bf).astype(jnp.float32)
        w2_32 = w2.astype(bf).astype(jnp.float32)
        h = jnp.maximum(x32 @ w1_32 + b1, 0.0)
        return MAX_ACTION * jnp.tanh(h.astype(bf).astype(jnp.float32) @ w2_32 + b2)

    # Reference 2: the true f32 PyTorch-Actor math -> looser tolerance
    # (bounds the real numerical deviation introduced by bf16 operands).
    def ref_f32(x):
        h = jnp.maximum(x @ w1 + b1, 0.0)
        return MAX_ACTION * jnp.tanh(h @ w2 + b2)

    err_bf = float(jnp.max(jnp.abs(out - ref_bf16(state))))
    err_f32 = float(jnp.max(jnp.abs(out - ref_f32(state))))
    assert jnp.allclose(out, ref_bf16(state), atol=5e-3, rtol=5e-3), err_bf
    assert jnp.allclose(out, ref_f32(state), atol=5e-2), err_f32

    # Multi-tile path: B=300 exercises the balanced tiling (2 tiles of 152,
    # <8 padded rows each) and the v7x "parallel" grid sharding.
    B2 = 300
    state2 = jax.random.normal(k_state2, (B2, STATE_DIM), jnp.float32)
    out2 = jax.block_until_ready(
        actor_forward(state2, params, MAX_ACTION, action_dim=action_dim))
    assert out2.shape == (B2, ACTION_DIM)
    assert jnp.allclose(out2, ref_bf16(state2), atol=5e-3, rtol=5e-3), (
        float(jnp.max(jnp.abs(out2 - ref_bf16(state2)))))

    print("KERNEL_OK")
</pallas_src>

<mosaic_0001>
module attributes {stable_mosaic.version = 11 : i64} {
  func.func @_actor_kernel(%arg0: i32, %arg1: memref<1xf32, #tpu.memory_space<smem>>, %arg2: memref<8x32xbf16, #tpu.memory_space<vmem>>, %arg3: memref<32x1024xbf16, #tpu.memory_space<vmem>>, %arg4: memref<1x1024xf32, #tpu.memory_space<vmem>>, %arg5: memref<1024x128xbf16, #tpu.memory_space<vmem>>, %arg6: memref<1x128xf32, #tpu.memory_space<vmem>>, %arg7: memref<8x128xf32, #tpu.memory_space<vmem>>) attributes {dimension_semantics = [#tpu.dimension_semantics<parallel>], iteration_bounds = array<i64: 1>, scalar_prefetch = 1 : i64, scratch_operands = 0 : i64, tpu.core_type = #tpu.core_type<tc>, window_params = [{transform_indices = @transform_0, window_bounds = array<i64: 8, 32>}, {pipeline_mode = #tpu.pipeline_mode<synchronous>, transform_indices = @transform_1, window_bounds = array<i64: 32, 1024>}, {pipeline_mode = #tpu.pipeline_mode<synchronous>, transform_indices = @transform_2, window_bounds = array<i64: 1, 1024>}, {pipeline_mode = #tpu.pipeline_mode<synchronous>, transform_indices = @transform_3, window_bounds = array<i64: 1024, 128>}, {pipeline_mode = #tpu.pipeline_mode<synchronous>, transform_indices = @transform_4, window_bounds = array<i64: 1, 128>}, {transform_indices = @transform_5, window_bounds = array<i64: 8, 128>}]} {
    %c0 = arith.constant 0 : index
    %c0_0 = arith.constant 0 : index
    %0 = vector.load %arg2[%c0, %c0_0] : memref<8x32xbf16, #tpu.memory_space<vmem>>, vector<8x32xbf16>
    %c0_1 = arith.constant 0 : index
    %c0_2 = arith.constant 0 : index
    %1 = vector.load %arg3[%c0_1, %c0_2] : memref<32x1024xbf16, #tpu.memory_space<vmem>>, vector<32x1024xbf16>
    %cst = arith.constant dense<0.000000e+00> : vector<8x1024xf32>
    %2 = tpu.matmul %0, %1, %cst {dimension_numbers = #tpu.dot_dimension_numbers<[1], [0], [0], [1], [0, 0, 1, 1], [], []>} : vector<8x32xbf16>, vector<32x1024xbf16>, vector<8x1024xf32> -> vector<8x1024xf32>
    %c0_3 = arith.constant 0 : index
    %c0_4 = arith.constant 0 : index
    %3 = vector.load %arg4[%c0_3, %c0_4] : memref<1x1024xf32, #tpu.memory_space<vmem>>, vector<1x1024xf32>
    %4 = vector.broadcast %3 : vector<1x1024xf32> to vector<8x1024xf32>
    %5 = arith.addf %2, %4 : vector<8x1024xf32>
    %cst_5 = arith.constant 0.000000e+00 : f32
    %6 = vector.broadcast %cst_5 : f32 to vector<8x1024xf32>
    %7 = arith.maximumf %5, %6 : vector<8x1024xf32>
    %8 = arith.truncf %7 : vector<8x1024xf32> to vector<8x1024xbf16>
    %c0_6 = arith.constant 0 : index
    %c0_7 = arith.constant 0 : index
    %9 = vector.load %arg5[%c0_6, %c0_7] : memref<1024x128xbf16, #tpu.memory_space<vmem>>, vector<1024x128xbf16>
    %cst_8 = arith.constant dense<0.000000e+00> : vector<8x128xf32>
    %10 = tpu.matmul %8, %9, %cst_8 {dimension_numbers = #tpu.dot_dimension_numbers<[1], [0], [0], [1], [0, 0, 1, 1], [], []>} : vector<8x1024xbf16>, vector<1024x128xbf16>, vector<8x128xf32> -> vector<8x128xf32>
    %c0_9 = arith.constant 0 : index
    %c0_10 = arith.constant 0 : index
    %11 = vector.load %arg6[%c0_9, %c0_10] : memref<1x128xf32, #tpu.memory_space<vmem>>, vector<1x128xf32>
    %12 = vector.broadcast %11 : vector<1x128xf32> to vector<8x128xf32>
    %13 = arith.addf %10, %12 : vector<8x128xf32>
    %c0_11 = arith.constant 0 : index
    %14 = memref.load %arg1[%c0_11] : memref<1xf32, #tpu.memory_space<smem>>
    %15 = math.tanh %13 : vector<8x128xf32>
    %16 = vector.broadcast %14 : f32 to vector<8x128xf32>
    %17 = arith.mulf %16, %15 : vector<8x128xf32>
    %c0_12 = arith.constant 0 : index
    %c0_13 = arith.constant 0 : index
    %18 = vector.load %arg7[%c0_12, %c0_13] : memref<8x128xf32, #tpu.memory_space<vmem>>, vector<8x128xf32>
    tpu.vector_store %arg7[%c0_12, %c0_13], %17 {strides = array<i32>} : memref<8x128xf32, #tpu.memory_space<vmem>>, vector<8x128xf32>,
    return
  }
  func.func @transform_0(%arg0: i32, %arg1: memref<1xf32, #tpu.memory_space<smem>>) -> (i32, i32) {
    %c0_i32 = arith.constant 0 : i32
    %c0_i32_0 = arith.constant 0 : i32
    return %arg0, %c0_i32 : i32, i32
  }
  func.func @transform_1(%arg0: i32, %arg1: memref<1xf32, #tpu.memory_space<smem>>) -> (i32, i32) {
    %c0_i32 = arith.constant 0 : i32
    %c0_i32_0 = arith.constant 0 : i32
    %c0_i32_1 = arith.constant 0 : i32
    return %c0_i32, %c0_i32_0 : i32, i32
  }
  func.func @transform_2(%arg0: i32, %arg1: memref<1xf32, #tpu.memory_space<smem>>) -> (i32, i32) {
    %c0_i32 = arith.constant 0 : i32
    %c0_i32_0 = arith.constant 0 : i32
    %c0_i32_1 = arith.constant 0 : i32
    return %c0_i32, %c0_i32_0 : i32, i32
  }
  func.func @transform_3(%arg0: i32, %arg1: memref<1xf32, #tpu.memory_space<smem>>) -> (i32, i32) {
    %c0_i32 = arith.constant 0 : i32
    %c0_i32_0 = arith.constant 0 : i32
    %c0_i32_1 = arith.constant 0 : i32
    return %c0_i32, %c0_i32_0 : i32, i32
  }
  func.func @transform_4(%arg0: i32, %arg1: memref<1xf32, #tpu.memory_space<smem>>) -> (i32, i32) {
    %c0_i32 = arith.constant 0 : i32
    %c0_i32_0 = arith.constant 0 : i32
    %c0_i32_1 = arith.constant 0 : i32
    return %c0_i32, %c0_i32_0 : i32, i32
  }
  func.func @transform_5(%arg0: i32, %arg1: memref<1xf32, #tpu.memory_space<smem>>) -> (i32, i32) {
    %c0_i32 = arith.constant 0 : i32
    %c0_i32_0 = arith.constant 0 : i32
    return %arg0, %c0_i32 : i32, i32
  }
}

</mosaic_0001>

<llo_original>
// kernel: actor_forward.1
$region0: #{actor_forward.1}
  #allocation0 [shape = 'u32[]', space=smem, size = 0x4, offset = 0x4, fixed_abs, tag = 'smem constant byte address 0x4 - core index']
  #allocation1 [shape = 'u32[144,128]{1,0:T(1,128)}', space=vmem, size = 0x12000, scoped, tag = 'internal scratch']
  #allocation2 [shape = 's32[1]{0}', space=sflag, size = 0x4, scoped, tag = 'scoped memory for actor_forward.1']
  #allocation3 [shape = 'f32[1]{0:T(128)S(6)}', space=smem, size = 0x200, scoped, tag = 'prefetched SMEM operand 0']
  %s0 = inlined_call_operand.<no memory space> [shape: f32[1], index: 0, kind: input, shape index: {}]
  %s1 = inlined_call_operand.vmem [shape: bf16[8,32], index: 1, kind: input, shape index: {}]
  %s2 = inlined_call_operand.hbm [shape: bf16[32,1024], index: 2, kind: input, shape index: {}]
  %s3 = inlined_call_operand.vmem [shape: f32[1,1024], index: 3, kind: input, shape index: {}]
  %s4 = inlined_call_operand.hbm [shape: bf16[1024,128], index: 4, kind: input, shape index: {}]
  %s5 = inlined_call_operand.vmem [shape: f32[1,128], index: 5, kind: input, shape index: {}]
  %s6 = inlined_call_operand.hbm [shape: f32[8,128], index: 6, kind: output, shape index: {}]
  %s7 = sld [smem:[#allocation0]]
  $region38: #{actor_forward.1} parent=0
    _
  %s9 = ssub.s32 1, %s7
  %s10 = scalar_select 0, %s9, %s7
  %11 = sst [smem:[#allocation3]] %s0
  $region1: #{actor_forward.1} parent=0
    #allocation4 [shape = 'u8[65536]{0}', space=vmem, size = 0x10000, scoped, tag = 'input window, operand 2, single buffered']
    #allocation5 [shape = 's32[1]{0}', space=sflag, size = 0x4, scoped, tag = 'scoped memory for actor_forward.1']
    #allocation6 [shape = 's32[1]{0}', space=sflag, size = 0x4, scoped, tag = 'scoped memory for actor_forward.1']
    #allocation7 [shape = 'u8[262144]{0}', space=vmem, size = 0x40000, scoped, tag = 'input window, operand 4, single buffered']
    #allocation8 [shape = 's32[1]{0}', space=sflag, size = 0x4, scoped, tag = 'scoped memory for actor_forward.1']
    #allocation9 [shape = 'u8[4096]{0}', space=vmem, size = 0x1000, scoped, tag = 'output window, operand 0, single buffered']
    %12 = vsyncpa [#allocation5], 0
    %13 = vsyncpa [#allocation8], 0
    %14 = vsyncpa [#allocation6], 0
    // Predicated region
    $region2: #{actor_forward.1} parent=1 // pred_check
      _
    $region3: #{actor_forward.1} parent=1 // pred_check_branch
      %16 = sbr.rel (0) target = $region5
    $region4: #{actor_forward.1} parent=1 // pred_region
      _
    $region5: #{actor_forward.1} parent=1 // pred_fallthru
      _
    // Predicated region
    $region6: #{actor_forward.1} parent=1 // pred_check
      _
    $region7: #{actor_forward.1} parent=1 // pred_check_branch
      %18 = sbr.rel (0) target = $region9
    $region8: #{actor_forward.1} parent=1 // pred_region
      %s20 = ssub.s32 2048, 2048
      %21 = vsyncadd [#allocation5], %s20
      %s22 = sshll.u32 [#allocation4], 4
      %s23 = int_to_ptr.vmem [resolvable:$true] %s22
      %28 = dma.hbm_to_vmem [thread:$0]  %s2, 2048, %s23, [#allocation5], 512, 512, 32
    $region9: #{actor_forward.1} parent=1 // pred_fallthru
      _
    // Predicated region
    $region10: #{actor_forward.1} parent=1 // pred_check
      _
    $region11: #{actor_forward.1} parent=1 // pred_check_branch
      %30 = sbr.rel (0) target = $region13
    $region12: #{actor_forward.1} parent=1 // pred_region
      _
    $region13: #{actor_forward.1} parent=1 // pred_fallthru
      _
    // Predicated region
    $region14: #{actor_forward.1} parent=1 // pred_check
      _
    $region15: #{actor_forward.1} parent=1 // pred_check_branch
      %32 = sbr.rel (0) target = $region17
    $region16: #{actor_forward.1} parent=1 // pred_region
      %s34 = ssub.s32 8192, 8192
      %35 = vsyncadd [#allocation8], %s34
      %s36 = sshll.u32 [#allocation7], 4
      %s37 = int_to_ptr.vmem [resolvable:$true] %s36
      %42 = dma.hbm_to_vmem [thread:$0]  %s4, 8192, %s37, [#allocation8], 64, 64, 4
    $region17: #{actor_forward.1} parent=1 // pred_fallthru
      _
    // Predicated region
    $region18: #{actor_forward.1} parent=1 // pred_check
      _
    $region19: #{actor_forward.1} parent=1 // pred_check_branch
      %44 = sbr.rel (0) target = $region21
    $region20: #{actor_forward.1} parent=1 // pred_region
      _
    $region21: #{actor_forward.1} parent=1 // pred_fallthru
      _
    // Predicated region
    $region22: #{actor_forward.1} parent=1 // pred_check
      _
    $region23: #{actor_forward.1} parent=1 // pred_check_branch
      %46 = sbr.rel (0) target = $region25
    $region24: #{actor_forward.1} parent=1 // pred_region
      %47 = dma.done [#allocation5], 2048
    $region25: #{actor_forward.1} parent=1 // pred_fallthru
      _
    // Predicated region
    $region26: #{actor_forward.1} parent=1 // pred_check
      _
    $region27: #{actor_forward.1} parent=1 // pred_check_branch
      %49 = sbr.rel (0) target = $region29
    $region28: #{actor_forward.1} parent=1 // pred_region
      %50 = dma.done [#allocation8], 8192
    $region29: #{actor_forward.1} parent=1 // pred_fallthru
      _
    %v52 = vld [vmem:[%s1] sm:$0xf]
    %v53 = vld [vmem:[#allocation4] sm:$0xff]
    %v54 = vld [vmem:[#allocation4 + $0x8] sm:$0xff]
    %v55 = vld [vmem:[#allocation4 + $0x10] sm:$0xff]
    %v56 = vld [vmem:[#allocation4 + $0x18] sm:$0xff]
    %v57 = vld [vmem:[#allocation4 + $0x20] sm:$0xff]
    %v58 = vld [vmem:[#allocation4 + $0x28] sm:$0xff]
    %v59 = vld [vmem:[#allocation4 + $0x30] sm:$0xff]
    %v60 = vld [vmem:[#allocation4 + $0x38] sm:$0xff]
    %v61 = vld [vmem:[#allocation4 + $0x40] sm:$0xff]
    %v62 = vld [vmem:[#allocation4 + $0x48] sm:$0xff]
    %v63 = vld [vmem:[#allocation4 + $0x50] sm:$0xff]
    %v64 = vld [vmem:[#allocation4 + $0x58] sm:$0xff]
    %v65 = vld [vmem:[#allocation4 + $0x60] sm:$0xff]
    %v66 = vld [vmem:[#allocation4 + $0x68] sm:$0xff]
    %v67 = vld [vmem:[#allocation4 + $0x70] sm:$0xff]
    %v68 = vld [vmem:[#allocation4 + $0x78] sm:$0xff]
    %v69 = vld [vmem:[%s3] sm:$0xff]
    %v71 = vlaneseq
    %v72 = vshrl.u32 %v71, 7
    %v73 = vsub.s32 0, %v72
    %v74 = vrot.slane %v69, %v73
    %v75 = vlaneseq
    %v76 = vshrl.u32 %v75, 7
    %v77 = vsub.s32 1, %v76
    %v78 = vrot.slane %v69, %v77
    %v79 = vlaneseq
    %v80 = vshrl.u32 %v79, 7
    %v81 = vsub.s32 2, %v80
    %v82 = vrot.slane %v69, %v81
    %v83 = vlaneseq
    %v84 = vshrl.u32 %v83, 7
    %v85 = vsub.s32 3, %v84
    %v86 = vrot.slane %v69, %v85
    %v87 = vlaneseq
    %v88 = vshrl.u32 %v87, 7
    %v89 = vsub.s32 4, %v88
    %v90 = vrot.slane %v69, %v89
    %v91 = vlaneseq
    %v92 = vshrl.u32 %v91, 7
    %v93 = vsub.s32 5, %v92
    %v94 = vrot.slane %v69, %v93
    %v95 = vlaneseq
    %v96 = vshrl.u32 %v95, 7
    %v97 = vsub.s32 6, %v96
    %v98 = vrot.slane %v69, %v97
    %v99 = vlaneseq
    %v100 = vshrl.u32 %v99, 7
    %v101 = vsub.s32 7, %v100
    %v102 = vrot.slane %v69, %v101
    %v127 = vunpack.c.l.b16 %v53
    %v128 = vunpack.c.h.b16 %v53
    %v129 = vunpack.c.l.b16 %v54
    %v130 = vunpack.c.h.b16 %v54
    %v131 = vunpack.c.l.b16 %v55
    %v132 = vunpack.c.h.b16 %v55
    %v133 = vunpack.c.l.b16 %v56
    %v134 = vunpack.c.h.b16 %v56
    %v135 = vunpack.c.l.b16 %v57
    %v136 = vunpack.c.h.b16 %v57
    %v137 = vunpack.c.l.b16 %v58
    %v138 = vunpack.c.h.b16 %v58
    %v139 = vunpack.c.l.b16 %v59
    %v140 = vunpack.c.h.b16 %v59
    %v141 = vunpack.c.l.b16 %v60
    %v142 = vunpack.c.h.b16 %v60
    %v143 = vunpack.c.l.b16 %v61
    %v144 = vunpack.c.h.b16 %v61
    %v145 = vunpack.c.l.b16 %v62
    %v146 = vunpack.c.h.b16 %v62
    %v147 = vunpack.c.l.b16 %v63
    %v148 = vunpack.c.h.b16 %v63
    %v149 = vunpack.c.l.b16 %v64
    %v150 = vunpack.c.h.b16 %v64
    %v151 = vunpack.c.l.b16 %v65
    %v152 = vunpack.c.h.b16 %v65
    %v153 = vunpack.c.l.b16 %v66
    %v154 = vunpack.c.h.b16 %v66
    %v155 = vunpack.c.l.b16 %v67
    %v156 = vunpack.c.h.b16 %v67
    %v157 = vunpack.c.l.b16 %v68
    %v158 = vunpack.c.h.b16 %v68
    %v159 = vpack.c.b16 %v135, %v127
    %v160 = vpack.c.b16 %v136, %v128
    %v161 = vpack.c.b16 %v137, %v129
    %v162 = vpack.c.b16 %v138, %v130
    %v163 = vpack.c.b16 %v139, %v131
    %v164 = vpack.c.b16 %v140, %v132
    %v165 = vpack.c.b16 %v141, %v133
    %v166 = vpack.c.b16 %v142, %v134
    %v167 = vpack.c.b16 %v151, %v143
    %v168 = vpack.c.b16 %v152, %v144
    %v169 = vpack.c.b16 %v153, %v145
    %v170 = vpack.c.b16 %v154, %v146
    %v171 = vpack.c.b16 %v155, %v147
    %v172 = vpack.c.b16 %v156, %v148
    %v173 = vpack.c.b16 %v157, %v149
    %v174 = vpack.c.b16 %v158, %v150
    %vm191 = vcmask 261120
    %v193 = vsel %vm191, %v52, 0
    %195 = vmatprep.subr.bf16.mxu0 0
    %196 = vmatpush1.bf16.msra.mxu0 0
    %197 = vmatprep.subr.bf16.mxu0 0
    %198 = vmatpush1.bf16.msra.mxu0 0
    %199 = vmatprep.subr.bf16.mxu0 0
    %200 = vmatpush1.bf16.msra.mxu0 0
    %201 = vmatprep.subr.bf16.mxu0 0
    %202 = vmatpush1.bf16.msra.mxu0 0
    %203 = vmatprep.subr.bf16.mxu0 0
    %204 = vmatpush1.bf16.msra.mxu0 0
    %205 = vmatprep.subr.bf16.mxu0 0
    %206 = vmatpush1.bf16.msra.mxu0 0
    %207 = vmatprep.subr.bf16.mxu0 %v168
    %208 = vmatpush1.bf16.msra.mxu0 %v167
    %209 = vmatprep.subr.bf16.mxu0 %v160
    %210 = vmatpush1.bf16.msra.mxu0 %v159
    %211 = vmatprep.subr.bf16.mxu0 0
    %212 = vmatpush2.bf16.msra.mxu0 0
    %213 = vmatprep.subr.bf16.mxu0 0
    %214 = vmatpush2.bf16.msra.mxu0 0
    %215 = vmatprep.subr.bf16.mxu0 0
    %216 = vmatpush2.bf16.msra.mxu0 0
    %217 = vmatprep.subr.bf16.mxu0 0
    %218 = vmatpush2.bf16.msra.mxu0 0
    %219 = vmatprep.subr.bf16.mxu0 0
    %220 = vmatpush2.bf16.msra.mxu0 0
    %221 = vmatprep.subr.bf16.mxu0 0
    %222 = vmatpush2.bf16.msra.mxu0 0
    %223 = vmatprep.subr.bf16.mxu0 0
    %224 = vmatpush2.bf16.msra.mxu0 0
    %225 = vmatprep.subr.bf16.mxu0 0
    %226 = vmatpush2.bf16.msra.mxu0 0
    %227 = vmatprep.mubr.bf16.mxu0 0
    %228 = vmatmul.mubr.bf16.gmra.mxu0 %v193
    %v229 = vpop.f32.mrf.mxu0
    %v230 = vadd.f32 %v74, %v229
    %v231 = vpop.f32.mrf.mxu0
    %v232 = vadd.f32 %v78, %v231
    %v233 = vpop.f32.mrf.mxu0
    %v234 = vpop.f32.mrf.mxu0
    %235 = vdwg.mxu0
    %236 = vmatprep.subr.bf16.mxu0 0
    %237 = vmatpush1.bf16.msra.mxu0 0
    %238 = vmatprep.subr.bf16.mxu0 0
    %239 = vmatpush1.bf16.msra.mxu0 0
    %240 = vmatprep.subr.bf16.mxu0 0
    %241 = vmatpush1.bf16.msra.mxu0 0
    %242 = vmatprep.subr.bf16.mxu0 0
    %243 = vmatpush1.bf16.msra.mxu0 0
    %244 = vmatprep.subr.bf16.mxu0 0
    %245 = vmatpush1.bf16.msra.mxu0 0
    %246 = vmatprep.subr.bf16.mxu0 0
    %247 = vmatpush1.bf16.msra.mxu0 0
    %248 = vmatprep.subr.bf16.mxu0 %v170
    %249 = vmatpush1.bf16.msra.mxu0 %v169
    %250 = vmatprep.subr.bf16.mxu0 %v162
    %251 = vmatpush1.bf16.msra.mxu0 %v161
    %252 = vmatprep.subr.bf16.mxu0 0
    %253 = vmatpush2.bf16.msra.mxu0 0
    %254 = vmatprep.subr.bf16.mxu0 0
    %255 = vmatpush2.bf16.msra.mxu0 0
    %256 = vmatprep.subr.bf16.mxu0 0
    %257 = vmatpush2.bf16.msra.mxu0 0
    %258 = vmatprep.subr.bf16.mxu0 0
    %259 = vmatpush2.bf16.msra.mxu0 0
    %260 = vmatprep.subr.bf16.mxu0 0
    %261 = vmatpush2.bf16.msra.mxu0 0
    %262 = vmatprep.subr.bf16.mxu0 0
    %263 = vmatpush2.bf16.msra.mxu0 0
    %264 = vmatprep.subr.bf16.mxu0 0
    %265 = vmatpush2.bf16.msra.mxu0 0
    %266 = vmatprep.subr.bf16.mxu0 0
    %267 = vmatpush2.bf16.msra.mxu0 0
    %268 = vmatprep.mubr.bf16.mxu0 0
    %269 = vmatmul.mubr.bf16.gmra.mxu0 %v193
    %v270 = vpop.f32.mrf.mxu0
    %v271 = vadd.f32 %v82, %v270
    %v272 = vpop.f32.mrf.mxu0
    %v273 = vadd.f32 %v86, %v272
    %v274 = vpop.f32.mrf.mxu0
    %v275 = vpop.f32.mrf.mxu0
    %276 = vdwg.mxu0
    %277 = vmatprep.subr.bf16.mxu0 0
    %278 = vmatpush1.bf16.msra.mxu0 0
    %279 = vmatprep.subr.bf16.mxu0 0
    %280 = vmatpush1.bf16.msra.mxu0 0
    %281 = vmatprep.subr.bf16.mxu0 0
    %282 = vmatpush1.bf16.msra.mxu0 0
    %283 = vmatprep.subr.bf16.mxu0 0
    %284 = vmatpush1.bf16.msra.mxu0 0
    %285 = vmatprep.subr.bf16.mxu0 0
    %286 = vmatpush1.bf16.msra.mxu0 0
    %287 = vmatprep.subr.bf16.mxu0 0
    %288 = vmatpush1.bf16.msra.mxu0 0
    %289 = vmatprep.subr.bf16.mxu0 %v172
    %290 = vmatpush1.bf16.msra.mxu0 %v171
    %291 = vmatprep.subr.bf16.mxu0 %v164
    %292 = vmatpush1.bf16.msra.mxu0 %v163
    %293 = vmatprep.subr.bf16.mxu0 0
    %294 = vmatpush2.bf16.msra.mxu0 0
    %295 = vmatprep.subr.bf16.mxu0 0
    %296 = vmatpush2.bf16.msra.mxu0 0
    %297 = vmatprep.subr.bf16.mxu0 0
    %298 = vmatpush2.bf16.msra.mxu0 0
    %299 = vmatprep.subr.bf16.mxu0 0
    %300 = vmatpush2.bf16.msra.mxu0 0
    %301 = vmatprep.subr.bf16.mxu0 0
    %302 = vmatpush2.bf16.msra.mxu0 0
    %303 = vmatprep.subr.bf16.mxu0 0
    %304 = vmatpush2.bf16.msra.mxu0 0
    %305 = vmatprep.subr.bf16.mxu0 0
    %306 = vmatpush2.bf16.msra.mxu0 0
    %307 = vmatprep.subr.bf16.mxu0 0
    %308 = vmatpush2.bf16.msra.mxu0 0
    %309 = vmatprep.mubr.bf16.mxu0 0
    %310 = vmatmul.mubr.bf16.gmra.mxu0 %v193
    %v311 = vpop.f32.mrf.mxu0
    %v312 = vadd.f32 %v90, %v311
    %v313 = vpop.f32.mrf.mxu0
    %v314 = vadd.f32 %v94, %v313
    %v315 = vpop.f32.mrf.mxu0
    %v316 = vpop.f32.mrf.mxu0
    %317 = vdwg.mxu0
    %318 = vmatprep.subr.bf16.mxu0 0
    %319 = vmatpush1.bf16.msra.mxu0 0
    %320 = vmatprep.subr.bf16.mxu0 0
    %321 = vmatpush1.bf16.msra.mxu0 0
    %322 = vmatprep.subr.bf16.mxu0 0
    %323 = vmatpush1.bf16.msra.mxu0 0
    %324 = vmatprep.subr.bf16.mxu0 0
    %325 = vmatpush1.bf16.msra.mxu0 0
    %326 = vmatprep.subr.bf16.mxu0 0
    %327 = vmatpush1.bf16.msra.mxu0 0
    %328 = vmatprep.subr.bf16.mxu0 0
    %329 = vmatpush1.bf16.msra.mxu0 0
    %330 = vmatprep.subr.bf16.mxu0 %v174
    %331 = vmatpush1.bf16.msra.mxu0 %v173
    %332 = vmatprep.subr.bf16.mxu0 %v166
    %333 = vmatpush1.bf16.msra.mxu0 %v165
    %334 = vmatprep.subr.bf16.mxu0 0
    %335 = vmatpush2.bf16.msra.mxu0 0
    %336 = vmatprep.subr.bf16.mxu0 0
    %337 = vmatpush2.bf16.msra.mxu0 0
    %338 = vmatprep.subr.bf16.mxu0 0
    %339 = vmatpush2.bf16.msra.mxu0 0
    %340 = vmatprep.subr.bf16.mxu0 0
    %341 = vmatpush2.bf16.msra.mxu0 0
    %342 = vmatprep.subr.bf16.mxu0 0
    %343 = vmatpush2.bf16.msra.mxu0 0
    %344 = vmatprep.subr.bf16.mxu0 0
    %345 = vmatpush2.bf16.msra.mxu0 0
    %346 = vmatprep.subr.bf16.mxu0 0
    %347 = vmatpush2.bf16.msra.mxu0 0
    %348 = vmatprep.subr.bf16.mxu0 0
    %349 = vmatpush2.bf16.msra.mxu0 0
    %350 = vmatprep.mubr.bf16.mxu0 0
    %351 = vmatmul.mubr.bf16.gmra.mxu0 %v193
    %v352 = vpop.f32.mrf.mxu0
    %v353 = vadd.f32 %v98, %v352
    %v354 = vpop.f32.mrf.mxu0
    %v355 = vadd.f32 %v102, %v354
    %v356 = vpop.f32.mrf.mxu0
    %v357 = vpop.f32.mrf.mxu0
    %358 = vdwg.mxu0
    %v359 = vmax.f32 %v230, 0.0
    %v360 = vmax.f32 %v232, 0.0
    %v361 = vmax.f32 %v271, 0.0
    %v362 = vmax.f32 %v273, 0.0
    %v363 = vmax.f32 %v312, 0.0
    %v364 = vmax.f32 %v314, 0.0
    %v365 = vmax.f32 %v353, 0.0
    %v366 = vmax.f32 %v355, 0.0
    %v367 = vpack.c.bf16 %v359, %v359
    %v368 = vpack.c.bf16 %v360, %v360
    %v369 = vpack.c.bf16 %v361, %v361
    %v370 = vpack.c.bf16 %v362, %v362
    %v371 = vpack.c.bf16 %v363, %v363
    %v372 = vpack.c.bf16 %v364, %v364
    %v373 = vpack.c.bf16 %v365, %v365
    %v374 = vpack.c.bf16 %v366, %v366
    %v375 = vld [vmem:[#allocation7] sm:$0xf]
    %v376 = vld [vmem:[#allocation7 + $0x4] sm:$0xf]
    %v377 = vld [vmem:[#allocation7 + $0x8] sm:$0xf]
    %v378 = vld [vmem:[#allocation7 + $0xc] sm:$0xf]
    %v379 = vld [vmem:[#allocation7 + $0x10] sm:$0xf]
    %v380 = vld [vmem:[#allocation7 + $0x14] sm:$0xf]
    %v381 = vld [vmem:[#allocation7 + $0x18] sm:$0xf]
    %v382 = vld [vmem:[#allocation7 + $0x1c] sm:$0xf]
    %v383 = vld [vmem:[#allocation7 + $0x20] sm:$0xf]
    %v384 = vld [vmem:[#allocation7 + $0x24] sm:$0xf]
    %v385 = vld [vmem:[#allocation7 + $0x28] sm:$0xf]
    %v386 = vld [vmem:[#allocation7 + $0x2c] sm:$0xf]
    %v387 = vld [vmem:[#allocation7 + $0x30] sm:$0xf]
    %v388 = vld [vmem:[#allocation7 + $0x34] sm:$0xf]
    %v389 = vld [vmem:[#allocation7 + $0x38] sm:$0xf]
    %v390 = vld [vmem:[#allocation7 + $0x3c] sm:$0xf]
    %v391 = vld [vmem:[#allocation7 + $0x40] sm:$0xf]
    %v392 = vld [vmem:[#allocation7 + $0x44] sm:$0xf]
    %v393 = vld [vmem:[#allocation7 + $0x48] sm:$0xf]
    %v394 = vld [vmem:[#allocation7 + $0x4c] sm:$0xf]
    %v395 = vld [vmem:[#allocation7 + $0x50] sm:$0xf]
    %v396 = vld [vmem:[#allocation7 + $0x54] sm:$0xf]
    %v397 = vld [vmem:[#allocation7 + $0x58] sm:$0xf]
    %v398 = vld [vmem:[#allocation7 + $0x5c] sm:$0xf]
    %v399 = vld [vmem:[#allocation7 + $0x60] sm:$0xf]
    %v400 = vld [vmem:[#allocation7 + $0x64] sm:$0xf]
    %v401 = vld [vmem:[#allocation7 + $0x68] sm:$0xf]
    %v402 = vld [vmem:[#allocation7 + $0x6c] sm:$0xf]
    %v403 = vld [vmem:[#allocation7 + $0x70] sm:$0xf]
    %v404 = vld [vmem:[#allocation7 + $0x74] sm:$0xf]
    %v405 = vld [vmem:[#allocation7 + $0x78] sm:$0xf]
    %v406 = vld [vmem:[#allocation7 + $0x7c] sm:$0xf]
    %v407 = vld [vmem:[#allocation7 + $0x80] sm:$0xf]
    %v408 = vld [vmem:[#allocation7 + $0x84] sm:$0xf]
    %v409 = vld [vmem:[#allocation7 + $0x88] sm:$0xf]
    %v410 = vld [vmem:[#allocation7 + $0x8c] sm:$0xf]
    %v411 = vld [vmem:[#allocation7 + $0x90] sm:$0xf]
    %v412 = vld [vmem:[#allocation7 + $0x94] sm:$0xf]
    %v413 = vld [vmem:[#allocation7 + $0x98] sm:$0xf]
    %v414 = vld [vmem:[#allocation7 + $0x9c] sm:$0xf]
    %v415 = vld [vmem:[#allocation7 + $0xa0] sm:$0xf]
    %v416 = vld [vmem:[#allocation7 + $0xa4] sm:$0xf]
    %v417 = vld [vmem:[#allocation7 + $0xa8] sm:$0xf]
    %v418 = vld [vmem:[#allocation7 + $0xac] sm:$0xf]
    %v419 = vld [vmem:[#allocation7 + $0xb0] sm:$0xf]
    %v420 = vld [vmem:[#allocation7 + $0xb4] sm:$0xf]
    %v421 = vld [vmem:[#allocation7 + $0xb8] sm:$0xf]
    %v422 = vld [vmem:[#allocation7 + $0xbc] sm:$0xf]
    %v423 = vld [vmem:[#allocation7 + $0xc0] sm:$0xf]
    %v424 = vld [vmem:[#allocation7 + $0xc4] sm:$0xf]
    %v425 = vld [vmem:[#allocation7 + $0xc8] sm:$0xf]
    %v426 = vld [vmem:[#allocation7 + $0xcc] sm:$0xf]
    %v427 = vld [vmem:[#allocation7 + $0xd0] sm:$0xf]
    %v428 = vld [vmem:[#allocation7 + $0xd4] sm:$0xf]
    %v429 = vld [vmem:[#allocation7 + $0xd8] sm:$0xf]
    %v430 = vld [vmem:[#allocation7 + $0xdc] sm:$0xf]
    %v431 = vld [vmem:[#allocation7 + $0xe0] sm:$0xf]
    %v432 = vld [vmem:[#allocation7 + $0xe4] sm:$0xf]
    %v433 = vld [vmem:[#allocation7 + $0xe8] sm:$0xf]
    %v434 = vld [vmem:[#allocation7 + $0xec] sm:$0xf]
    %v435 = vld [vmem:[#allocation7 + $0xf0] sm:$0xf]
    %v436 = vld [vmem:[#allocation7 + $0xf4] sm:$0xf]
    %v437 = vld [vmem:[#allocation7 + $0xf8] sm:$0xf]
    %v438 = vld [vmem:[#allocation7 + $0xfc] sm:$0xf]
    %v439 = vld [vmem:[#allocation7 + $0x100] sm:$0xf]
    %v440 = vld [vmem:[#allocation7 + $0x104] sm:$0xf]
    %v441 = vld [vmem:[#allocation7 + $0x108] sm:$0xf]
    %v442 = vld [vmem:[#allocation7 + $0x10c] sm:$0xf]
    %v443 = vld [vmem:[#allocation7 + $0x110] sm:$0xf]
    %v444 = vld [vmem:[#allocation7 + $0x114] sm:$0xf]
    %v445 = vld [vmem:[#allocation7 + $0x118] sm:$0xf]
    %v446 = vld [vmem:[#allocation7 + $0x11c] sm:$0xf]
    %v447 = vld [vmem:[#allocation7 + $0x120] sm:$0xf]
    %v448 = vld [vmem:[#allocation7 + $0x124] sm:$0xf]
    %v449 = vld [vmem:[#allocation7 + $0x128] sm:$0xf]
    %v450 = vld [vmem:[#allocation7 + $0x12c] sm:$0xf]
    %v451 = vld [vmem:[#allocation7 + $0x130] sm:$0xf]
    %v452 = vld [vmem:[#allocation7 + $0x134] sm:$0xf]
    %v453 = vld [vmem:[#allocation7 + $0x138] sm:$0xf]
    %v454 = vld [vmem:[#allocation7 + $0x13c] sm:$0xf]
    %v455 = vld [vmem:[#allocation7 + $0x140] sm:$0xf]
    %v456 = vld [vmem:[#allocation7 + $0x144] sm:$0xf]
    %v457 = vld [vmem:[#allocation7 + $0x148] sm:$0xf]
    %v458 = vld [vmem:[#allocation7 + $0x14c] sm:$0xf]
    %v459 = vld [vmem:[#allocation7 + $0x150] sm:$0xf]
    %v460 = vld [vmem:[#allocation7 + $0x154] sm:$0xf]
    %v461 = vld [vmem:[#allocation7 + $0x158] sm:$0xf]
    %v462 = vld [vmem:[#allocation7 + $0x15c] sm:$0xf]
    %v463 = vld [vmem:[#allocation7 + $0x160] sm:$0xf]
    %v464 = vld [vmem:[#allocation7 + $0x164] sm:$0xf]
    %v465 = vld [vmem:[#allocation7 + $0x168] sm:$0xf]
    %v466 = vld [vmem:[#allocation7 + $0x16c] sm:$0xf]
    %v467 = vld [vmem:[#allocation7 + $0x170] sm:$0xf]
    %v468 = vld [vmem:[#allocation7 + $0x174] sm:$0xf]
    %v469 = vld [vmem:[#allocation7 + $0x178] sm:$0xf]
    %v470 = vld [vmem:[#allocation7 + $0x17c] sm:$0xf]
    %v471 = vld [vmem:[#allocation7 + $0x180] sm:$0xf]
    %v472 = vld [vmem:[#allocation7 + $0x184] sm:$0xf]
    %v473 = vld [vmem:[#allocation7 + $0x188] sm:$0xf]
    %v474 = vld [vmem:[#allocation7 + $0x18c] sm:$0xf]
    %v475 = vld [vmem:[#allocation7 + $0x190] sm:$0xf]
    %v476 = vld [vmem:[#allocation7 + $0x194] sm:$0xf]
    %v477 = vld [vmem:[#allocation7 + $0x198] sm:$0xf]
    %v478 = vld [vmem:[#allocation7 + $0x19c] sm:$0xf]
    %v479 = vld [vmem:[#allocation7 + $0x1a0] sm:$0xf]
    %v480 = vld [vmem:[#allocation7 + $0x1a4] sm:$0xf]
    %v481 = vld [vmem:[#allocation7 + $0x1a8] sm:$0xf]
    %v482 = vld [vmem:[#allocation7 + $0x1ac] sm:$0xf]
    %v483 = vld [vmem:[#allocation7 + $0x1b0] sm:$0xf]
    %v484 = vld [vmem:[#allocation7 + $0x1b4] sm:$0xf]
    %v485 = vld [vmem:[#allocation7 + $0x1b8] sm:$0xf]
    %v486 = vld [vmem:[#allocation7 + $0x1bc] sm:$0xf]
    %v487 = vld [vmem:[#allocation7 + $0x1c0] sm:$0xf]
    %v488 = vld [vmem:[#allocation7 + $0x1c4] sm:$0xf]
    %v489 = vld [vmem:[#allocation7 + $0x1c8] sm:$0xf]
    %v490 = vld [vmem:[#allocation7 + $0x1cc] sm:$0xf]
    %v491 = vld [vmem:[#allocation7 + $0x1d0] sm:$0xf]
    %v492 = vld [vmem:[#allocation7 + $0x1d4] sm:$0xf]
    %v493 = vld [vmem:[#allocation7 + $0x1d8] sm:$0xf]
    %v494 = vld [vmem:[#allocation7 + $0x1dc] sm:$0xf]
    %v495 = vld [vmem:[#allocation7 + $0x1e0] sm:$0xf]
    %v496 = vld [vmem:[#allocation7 + $0x1e4] sm:$0xf]
    %v497 = vld [vmem:[#allocation7 + $0x1e8] sm:$0xf]
    %v498 = vld [vmem:[#allocation7 + $0x1ec] sm:$0xf]
    %v499 = vld [vmem:[#allocation7 + $0x1f0] sm:$0xf]
    %v500 = vld [vmem:[#allocation7 + $0x1f4] sm:$0xf]
    %v501 = vld [vmem:[#allocation7 + $0x1f8] sm:$0xf]
    %v502 = vld [vmem:[#allocation7 + $0x1fc] sm:$0xf]
    %v503 = vld [vmem:[%s5] sm:$0x1]
    %v505 = vlaneseq
    %v506 = vshrl.u32 %v505, 7
    %v507 = vsub.s32 0, %v506
    %v508 = vrot.slane %v503, %v507
    %v638 = vunpack.c.l.b16 %v375
    %v639 = vunpack.c.l.b16 %v376
    %v640 = vunpack.c.l.b16 %v377
    %v641 = vunpack.c.l.b16 %v378
    %v642 = vunpack.c.l.b16 %v379
    %v643 = vunpack.c.l.b16 %v380
    %v644 = vunpack.c.l.b16 %v381
    %v645 = vunpack.c.l.b16 %v382
    %v646 = vunpack.c.l.b16 %v383
    %v647 = vunpack.c.l.b16 %v384
    %v648 = vunpack.c.l.b16 %v385
    %v649 = vunpack.c.l.b16 %v386
    %v650 = vunpack.c.l.b16 %v387
    %v651 = vunpack.c.l.b16 %v388
    %v652 = vunpack.c.l.b16 %v389
    %v653 = vunpack.c.l.b16 %v390
    %v654 = vunpack.c.l.b16 %v391
    %v655 = vunpack.c.l.b16 %v392
    %v656 = vunpack.c.l.b16 %v393
    %v657 = vunpack.c.l.b16 %v394
    %v658 = vunpack.c.l.b16 %v395
    %v659 = vunpack.c.l.b16 %v396
    %v660 = vunpack.c.l.b16 %v397
    %v661 = vunpack.c.l.b16 %v398
    %v662 = vunpack.c.l.b16 %v399
    %v663 = vunpack.c.l.b16 %v400
    %v664 = vunpack.c.l.b16 %v401
    %v665 = vunpack.c.l.b16 %v402
    %v666 = vunpack.c.l.b16 %v403
    %v667 = vunpack.c.l.b16 %v404
    %v668 = vunpack.c.l.b16 %v405
    %v669 = vunpack.c.l.b16 %v406
    %v670 = vunpack.c.l.b16 %v407
    %v671 = vunpack.c.l.b16 %v408
    %v672 = vunpack.c.l.b16 %v409
    %v673 = vunpack.c.l.b16 %v410
    %v674 = vunpack.c.l.b16 %v411
    %v675 = vunpack.c.l.b16 %v412
    %v676 = vunpack.c.l.b16 %v413
    %v677 = vunpack.c.l.b16 %v414
    %v678 = vunpack.c.l.b16 %v415
    %v679 = vunpack.c.l.b16 %v416
    %v680 = vunpack.c.l.b16 %v417
    %v681 = vunpack.c.l.b16 %v418
    %v682 = vunpack.c.l.b16 %v419
    %v683 = vunpack.c.l.b16 %v420
    %v684 = vunpack.c.l.b16 %v421
    %v685 = vunpack.c.l.b16 %v422
    %v686 = vunpack.c.l.b16 %v423
    %v687 = vunpack.c.l.b16 %v424
    %v688 = vunpack.c.l.b16 %v425
    %v689 = vunpack.c.l.b16 %v426
    %v690 = vunpack.c.l.b16 %v427
    %v691 = vunpack.c.l.b16 %v428
    %v692 = vunpack.c.l.b16 %v429
    %v693 = vunpack.c.l.b16 %v430
    %v694 = vunpack.c.l.b16 %v431
    %v695 = vunpack.c.l.b16 %v432
    %v696 = vunpack.c.l.b16 %v433
    %v697 = vunpack.c.l.b16 %v434
    %v698 = vunpack.c.l.b16 %v435
    %v699 = vunpack.c.l.b16 %v436
    %v700 = vunpack.c.l.b16 %v437
    %v701 = vunpack.c.l.b16 %v438
    %v702 = vunpack.c.l.b16 %v439
    %v703 = vunpack.c.l.b16 %v440
    %v704 = vunpack.c.l.b16 %v441
    %v705 = vunpack.c.l.b16 %v442
    %v706 = vunpack.c.l.b16 %v443
    %v707 = vunpack.c.l.b16 %v444
    %v708 = vunpack.c.l.b16 %v445
    %v709 = vunpack.c.l.b16 %v446
    %v710 = vunpack.c.l.b16 %v447
    %v711 = vunpack.c.l.b16 %v448
    %v712 = vunpack.c.l.b16 %v449
    %v713 = vunpack.c.l.b16 %v450
    %v714 = vunpack.c.l.b16 %v451
    %v715 = vunpack.c.l.b16 %v452
    %v716 = vunpack.c.l.b16 %v453
    %v717 = vunpack.c.l.b16 %v454
    %v718 = vunpack.c.l.b16 %v455
    %v719 = vunpack.c.l.b16 %v456
    %v720 = vunpack.c.l.b16 %v457
    %v721 = vunpack.c.l.b16 %v458
    %v722 = vunpack.c.l.b16 %v459
    %v723 = vunpack.c.l.b16 %v460
    %v724 = vunpack.c.l.b16 %v461
    %v725 = vunpack.c.l.b16 %v462
    %v726 = vunpack.c.l.b16 %v463
    %v727 = vunpack.c.l.b16 %v464
    %v728 = vunpack.c.l.b16 %v465
    %v729 = vunpack.c.l.b16 %v466
    %v730 = vunpack.c.l.b16 %v467
    %v731 = vunpack.c.l.b16 %v468
    %v732 = vunpack.c.l.b16 %v469
    %v733 = vunpack.c.l.b16 %v470
    %v734 = vunpack.c.l.b16 %v471
    %v735 = vunpack.c.l.b16 %v472
    %v736 = vunpack.c.l.b16 %v473
    %v737 = vunpack.c.l.b16 %v474
    %v738 = vunpack.c.l.b16 %v475
    %v739 = vunpack.c.l.b16 %v476
    %v740 = vunpack.c.l.b16 %v477
    %v741 = vunpack.c.l.b16 %v478
    %v742 = vunpack.c.l.b16 %v479
    %v743 = vunpack.c.l.b16 %v480
    %v744 = vunpack.c.l.b16 %v481
    %v745 = vunpack.c.l.b16 %v482
    %v746 = vunpack.c.l.b16 %v483
    %v747 = vunpack.c.l.b16 %v484
    %v748 = vunpack.c.l.b16 %v485
    %v749 = vunpack.c.l.b16 %v486
    %v750 = vunpack.c.l.b16 %v487
    %v751 = vunpack.c.l.b16 %v488
    %v752 = vunpack.c.l.b16 %v489
    %v753 = vunpack.c.l.b16 %v490
    %v754 = vunpack.c.l.b16 %v491
    %v755 = vunpack.c.l.b16 %v492
    %v756 = vunpack.c.l.b16 %v493
    %v757 = vunpack.c.l.b16 %v494
    %v758 = vunpack.c.l.b16 %v495
    %v759 = vunpack.c.l.b16 %v496
    %v760 = vunpack.c.l.b16 %v497
    %v761 = vunpack.c.l.b16 %v498
    %v762 = vunpack.c.l.b16 %v499
    %v763 = vunpack.c.l.b16 %v500
    %v764 = vunpack.c.l.b16 %v501
    %v765 = vunpack.c.l.b16 %v502
    %v766 = vpack.c.b16 %v639, %v638
    %v767 = vpack.c.b16 %v641, %v640
    %v768 = vpack.c.b16 %v643, %v642
    %v769 = vpack.c.b16 %v645, %v644
    %v770 = vpack.c.b16 %v647, %v646
    %v771 = vpack.c.b16 %v649, %v648
    %v772 = vpack.c.b16 %v651, %v650
    %v773 = vpack.c.b16 %v653, %v652
    %v774 = vpack.c.b16 %v655, %v654
    %v775 = vpack.c.b16 %v657, %v656
    %v776 = vpack.c.b16 %v659, %v658
    %v777 = vpack.c.b16 %v661, %v660
    %v778 = vpack.c.b16 %v663, %v662
    %v779 = vpack.c.b16 %v665, %v664
    %v780 = vpack.c.b16 %v667, %v666
    %v781 = vpack.c.b16 %v669, %v668
    %v782 = vpack.c.b16 %v671, %v670
    %v783 = vpack.c.b16 %v673, %v672
    %v784 = vpack.c.b16 %v675, %v674
    %v785 = vpack.c.b16 %v677, %v676
    %v786 = vpack.c.b16 %v679, %v678
    %v787 = vpack.c.b16 %v681, %v680
    %v788 = vpack.c.b16 %v683, %v682
    %v789 = vpack.c.b16 %v685, %v684
    %v790 = vpack.c.b16 %v687, %v686
    %v791 = vpack.c.b16 %v689, %v688
    %v792 = vpack.c.b16 %v691, %v690
    %v793 = vpack.c.b16 %v693, %v692
    %v794 = vpack.c.b16 %v695, %v694
    %v795 = vpack.c.b16 %v697, %v696
    %v796 = vpack.c.b16 %v699, %v698
    %v797 = vpack.c.b16 %v701, %v700
    %v798 = vpack.c.b16 %v703, %v702
    %v799 = vpack.c.b16 %v705, %v704
    %v800 = vpack.c.b16 %v707, %v706
    %v801 = vpack.c.b16 %v709, %v708
    %v802 = vpack.c.b16 %v711, %v710
    %v803 = vpack.c.b16 %v713, %v712
    %v804 = vpack.c.b16 %v715, %v714
    %v805 = vpack.c.b16 %v717, %v716
    %v806 = vpack.c.b16 %v719, %v718
    %v807 = vpack.c.b16 %v721, %v720
    %v808 = vpack.c.b16 %v723, %v722
    %v809 = vpack.c.b16 %v725, %v724
    %v810 = vpack.c.b16 %v727, %v726
    %v811 = vpack.c.b16 %v729, %v728
    %v812 = vpack.c.b16 %v731, %v730
    %v813 = vpack.c.b16 %v733, %v732
    %v814 = vpack.c.b16 %v735, %v734
    %v815 = vpack.c.b16 %v737, %v736
    %v816 = vpack.c.b16 %v739, %v738
    %v817 = vpack.c.b16 %v741, %v740
    %v818 = vpack.c.b16 %v743, %v742
    %v819 = vpack.c.b16 %v745, %v744
    %v820 = vpack.c.b16 %v747, %v746
    %v821 = vpack.c.b16 %v749, %v748
    %v822 = vpack.c.b16 %v751, %v750
    %v823 = vpack.c.b16 %v753, %v752
    %v824 = vpack.c.b16 %v755, %v754
    %v825 = vpack.c.b16 %v757, %v756
    %v826 = vpack.c.b16 %v759, %v758
    %v827 = vpack.c.b16 %v761, %v760
    %v828 = vpack.c.b16 %v763, %v762
    %v829 = vpack.c.b16 %v765, %v764
    %894 = vmatprep.subr.bf16.mxu0 0
    %895 = vmatpush1.bf16.msra.mxu0 %v773
    %896 = vmatprep.subr.bf16.mxu0 0
    %897 = vmatpush1.bf16.msra.mxu0 %v772
    %898 = vmatprep.subr.bf16.mxu0 0
    %899 = vmatpush1.bf16.msra.mxu0 %v771
    %900 = vmatprep.subr.bf16.mxu0 0
    %901 = vmatpush1.bf16.msra.mxu0 %v770
    %902 = vmatprep.subr.bf16.mxu0 0
    %903 = vmatpush1.bf16.msra.mxu0 %v769
    %904 = vmatprep.subr.bf16.mxu0 0
    %905 = vmatpush1.bf16.msra.mxu0 %v768
    %906 = vmatprep.subr.bf16.mxu0 0
    %907 = vmatpush1.bf16.msra.mxu0 %v767
    %908 = vmatprep.subr.bf16.mxu0 0
    %909 = vmatpush1.bf16.msra.mxu0 %v766
    %910 = vmatprep.subr.bf16.mxu0 0
    %911 = vmatpush2.bf16.msra.mxu0 %v781
    %912 = vmatprep.subr.bf16.mxu0 0
    %913 = vmatpush2.bf16.msra.mxu0 %v780
    %914 = vmatprep.subr.bf16.mxu0 0
    %915 = vmatpush2.bf16.msra.mxu0 %v779
    %916 = vmatprep.subr.bf16.mxu0 0
    %917 = vmatpush2.bf16.msra.mxu0 %v778
    %918 = vmatprep.subr.bf16.mxu0 0
    %919 = vmatpush2.bf16.msra.mxu0 %v777
    %920 = vmatprep.subr.bf16.mxu0 0
    %921 = vmatpush2.bf16.msra.mxu0 %v776
    %922 = vmatprep.subr.bf16.mxu0 0
    %923 = vmatpush2.bf16.msra.mxu0 %v775
    %924 = vmatprep.subr.bf16.mxu0 0
    %925 = vmatpush2.bf16.msra.mxu0 %v774
    %926 = vmatprep.mubr.bf16.mxu0 %v368
    %927 = vmatmul.mubr.bf16.gmra.mxu0 %v367
    %v928 = vpop.f32.mrf.mxu0
    %v929 = vadd.f32 %v508, %v928
    %v930 = vpop.f32.mrf.mxu0
    %v931 = vpop.f32.mrf.mxu0
    %v932 = vpop.f32.mrf.mxu0
    %933 = vdwg.mxu0
    %934 = vmatprep.subr.bf16.mxu0 0
    %935 = vmatpush1.bf16.msra.mxu0 %v789
    %936 = vmatprep.subr.bf16.mxu0 0
    %937 = vmatpush1.bf16.msra.mxu0 %v788
    %938 = vmatprep.subr.bf16.mxu0 0
    %939 = vmatpush1.bf16.msra.mxu0 %v787
    %940 = vmatprep.subr.bf16.mxu0 0
    %941 = vmatpush1.bf16.msra.mxu0 %v786
    %942 = vmatprep.subr.bf16.mxu0 0
    %943 = vmatpush1.bf16.msra.mxu0 %v785
    %944 = vmatprep.subr.bf16.mxu0 0
    %945 = vmatpush1.bf16.msra.mxu0 %v784
    %946 = vmatprep.subr.bf16.mxu0 0
    %947 = vmatpush1.bf16.msra.mxu0 %v783
    %948 = vmatprep.subr.bf16.mxu0 0
    %949 = vmatpush1.bf16.msra.mxu0 %v782
    %950 = vmatprep.subr.bf16.mxu0 0
    %951 = vmatpush2.bf16.msra.mxu0 %v797
    %952 = vmatprep.subr.bf16.mxu0 0
    %953 = vmatpush2.bf16.msra.mxu0 %v796
    %954 = vmatprep.subr.bf16.mxu0 0
    %955 = vmatpush2.bf16.msra.mxu0 %v795
    %956 = vmatprep.subr.bf16.mxu0 0
    %957 = vmatpush2.bf16.msra.mxu0 %v794
    %958 = vmatprep.subr.bf16.mxu0 0
    %959 = vmatpush2.bf16.msra.mxu0 %v793
    %960 = vmatprep.subr.bf16.mxu0 0
    %961 = vmatpush2.bf16.msra.mxu0 %v792
    %962 = vmatprep.subr.bf16.mxu0 0
    %963 = vmatpush2.bf16.msra.mxu0 %v791
    %964 = vmatprep.subr.bf16.mxu0 0
    %965 = vmatpush2.bf16.msra.mxu0 %v790
    %966 = vmatprep.mubr.bf16.mxu0 %v370
    %967 = vmatmul.mubr.bf16.gmra.mxu0 %v369
    %v968 = vpop.f32.mrf.mxu0
    %v969 = vadd.f32 %v929, %v968
    %v970 = vpop.f32.mrf.mxu0
    %v971 = vpop.f32.mrf.mxu0
    %v972 = vpop.f32.mrf.mxu0
    %973 = vdwg.mxu0
    %974 = vmatprep.subr.bf16.mxu0 0
    %975 = vmatpush1.bf16.msra.mxu0 %v805
    %976 = vmatprep.subr.bf16.mxu0 0
    %977 = vmatpush1.bf16.msra.mxu0 %v804
    %978 = vmatprep.subr.bf16.mxu0 0
    %979 = vmatpush1.bf16.msra.mxu0 %v803
    %980 = vmatprep.subr.bf16.mxu0 0
    %981 = vmatpush1.bf16.msra.mxu0 %v802
    %982 = vmatprep.subr.bf16.mxu0 0
    %983 = vmatpush1.bf16.msra.mxu0 %v801
    %984 = vmatprep.subr.bf16.mxu0 0
    %985 = vmatpush1.bf16.msra.mxu0 %v800
    %986 = vmatprep.subr.bf16.mxu0 0
    %987 = vmatpush1.bf16.msra.mxu0 %v799
    %988 = vmatprep.subr.bf16.mxu0 0
    %989 = vmatpush1.bf16.msra.mxu0 %v798
    %990 = vmatprep.subr.bf16.mxu0 0
    %991 = vmatpush2.bf16.msra.mxu0 %v813
    %992 = vmatprep.subr.bf16.mxu0 0
    %993 = vmatpush2.bf16.msra.mxu0 %v812
    %994 = vmatprep.subr.bf16.mxu0 0
    %995 = vmatpush2.bf16.msra.mxu0 %v811
    %996 = vmatprep.subr.bf16.mxu0 0
    %997 = vmatpush2.bf16.msra.mxu0 %v810
    %998 = vmatprep.subr.bf16.mxu0 0
    %999 = vmatpush2.bf16.msra.mxu0 %v809
    %1000 = vmatprep.subr.bf16.mxu0 0
    %1001 = vmatpush2.bf16.msra.mxu0 %v808
    %1002 = vmatprep.subr.bf16.mxu0 0
    %1003 = vmatpush2.bf16.msra.mxu0 %v807
    %1004 = vmatprep.subr.bf16.mxu0 0
    %1005 = vmatpush2.bf16.msra.mxu0 %v806
    %1006 = vmatprep.mubr.bf16.mxu0 %v372
    %1007 = vmatmul.mubr.bf16.gmra.mxu0 %v371
    %v1008 = vpop.f32.mrf.mxu0
    %v1009 = vadd.f32 %v969, %v1008
    %v1010 = vpop.f32.mrf.mxu0
    %v1011 = vpop.f32.mrf.mxu0
    %v1012 = vpop.f32.mrf.mxu0
    %1013 = vdwg.mxu0
    %1014 = vmatprep.subr.bf16.mxu0 0
    %1015 = vmatpush1.bf16.msra.mxu0 %v821
    %1016 = vmatprep.subr.bf16.mxu0 0
    %1017 = vmatpush1.bf16.msra.mxu0 %v820
    %1018 = vmatprep.subr.bf16.mxu0 0
    %1019 = vmatpush1.bf16.msra.mxu0 %v819
    %1020 = vmatprep.subr.bf16.mxu0 0
    %1021 = vmatpush1.bf16.msra.mxu0 %v818
    %1022 = vmatprep.subr.bf16.mxu0 0
    %1023 = vmatpush1.bf16.msra.mxu0 %v817
    %1024 = vmatprep.subr.bf16.mxu0 0
    %1025 = vmatpush1.bf16.msra.mxu0 %v816
    %1026 = vmatprep.subr.bf16.mxu0 0
    %1027 = vmatpush1.bf16.msra.mxu0 %v815
    %1028 = vmatprep.subr.bf16.mxu0 0
    %1029 = vmatpush1.bf16.msra.mxu0 %v814
    %1030 = vmatprep.subr.bf16.mxu0 0
    %1031 = vmatpush2.bf16.msra.mxu0 %v829
    %1032 = vmatprep.subr.bf16.mxu0 0
    %1033 = vmatpush2.bf16.msra.mxu0 %v828
    %1034 = vmatprep.subr.bf16.mxu0 0
    %1035 = vmatpush2.bf16.msra.mxu0 %v827
    %1036 = vmatprep.subr.bf16.mxu0 0
    %1037 = vmatpush2.bf16.msra.mxu0 %v826
    %1038 = vmatprep.subr.bf16.mxu0 0
    %1039 = vmatpush2.bf16.msra.mxu0 %v825
    %1040 = vmatprep.subr.bf16.mxu0 0
    %1041 = vmatpush2.bf16.msra.mxu0 %v824
    %1042 = vmatprep.subr.bf16.mxu0 0
    %1043 = vmatpush2.bf16.msra.mxu0 %v823
    %1044 = vmatprep.subr.bf16.mxu0 0
    %1045 = vmatpush2.bf16.msra.mxu0 %v822
    %1046 = vmatprep.mubr.bf16.mxu0 %v374
    %1047 = vmatmul.mubr.bf16.gmra.mxu0 %v373
    %v1048 = vpop.f32.mrf.mxu0
    %v1049 = vadd.f32 %v1009, %v1048
    %v1050 = vpop.f32.mrf.mxu0
    %v1051 = vpop.f32.mrf.mxu0
    %v1052 = vpop.f32.mrf.mxu0
    %1053 = vdwg.mxu0
    %s1054 = sld [smem:[#allocation3]]
    %v1055 = vtanh.pop %v1049
    %v1056 = vstv %s1054
    %v1057 = vmul.f32 %v1056, %v1055
    %1058 = vst [vmem:[#allocation9] sm:$0xff] %v1057
    // Predicated region
    $region30: #{actor_forward.1} parent=1 // pred_check
      _
    $region31: #{actor_forward.1} parent=1 // pred_check_branch
      %1060 = sbr.rel (0) target = $region33
    $region32: #{actor_forward.1} parent=1 // pred_region
      %s1062 = ssub.s32 128, 128
      %1063 = vsyncadd [#allocation6], %s1062
      %s1065 = sshll.u32 [#allocation9], 4
      %s1066 = int_to_ptr.vmem [resolvable:$true] %s1065
      %1068 = dma.vmem_to_hbm [thread:$0]  %s1066, 128, %s6, [#allocation6]
    $region33: #{actor_forward.1} parent=1 // pred_fallthru
      _
    // Predicated region
    $region34: #{actor_forward.1} parent=1 // pred_check
      _
    $region35: #{actor_forward.1} parent=1 // pred_check_branch
      %1070 = sbr.rel (0) target = $region37
    $region36: #{actor_forward.1} parent=1 // pred_region
      %1071 = dma.done [#allocation6], 128
    $region37: #{actor_forward.1} parent=1 // pred_fallthru
      _
    %1072 = vsyncpa [#allocation5], 1
    %1073 = vsyncpa [#allocation8], 1
    %1074 = vsyncpa [#allocation6], 1

</llo_original>
